<compile_context>
chip_gen: v5e
topology: v5e:2x2
jax: 0.10.0
libtpu: 0.0.40
codegen_flags: <defaults>
</compile_context>

<pallas_src>
import functools
import math

import numpy as np
import jax
import jax.numpy as jnp
from jax.experimental import pallas as pl
from jax.experimental.pallas import tpu as pltpu


# ----------------------------------------------------------------------------
# Deterministic filterbank initialization (mirrors the module's init_filters)
# ----------------------------------------------------------------------------
def compute_xi_max(Q):
    return max(1.0 / (1.0 + 2.0 ** (3.0 / Q)), 0.35)


def compute_sigma_psi(xi, Q, r=math.sqrt(0.5)):
    factor = 1.0 / 2.0 ** (1.0 / Q)
    term1 = (1.0 - factor) / (1.0 + factor)
    term2 = 1.0 / math.sqrt(2.0 * math.log(1.0 / r))
    return xi * term1 * term2


def compute_wavelet_parameters(N, Q):
    xi_curr = compute_xi_max(Q)
    sigma_curr = compute_sigma_psi(xi_curr, Q, r=math.sqrt(0.5))
    xi, sigma = [], []
    factor = 1.0 / 2.0 ** (1.0 / Q)
    for _ in range(N * Q):
        xi.append(xi_curr)
        sigma.append(sigma_curr)
        xi_curr *= factor
        sigma_curr *= factor
    return xi, sigma


def morlet_1d(T, xi, sigma):
    # TODO(synk): simplified Morlet (no P_max periodization / l1 normalization);
    # deterministic stand-in for the battle_lemarie / fb.morlet1D filterbank.
    freqs = np.fft.fftfreq(T)
    gabor = np.exp(-((freqs - xi) ** 2) / (2.0 * sigma ** 2))
    low_pass = np.exp(-(freqs ** 2) / (2.0 * sigma ** 2))
    kappa = gabor[0] / low_pass[0]
    return gabor - kappa * low_pass          # real-valued, hat(psi)(0) == 0


def build_psi_hat(N, Q, T):
    xi, sigma = compute_wavelet_parameters(N, Q)
    psi = np.stack([morlet_1d(T, x, s) for x, s in zip(xi, sigma)], 0)   # (K, T)
    # cplx.from_numpy: trailing (re, im) axis with im == 0
    return np.stack([psi, np.zeros_like(psi)], axis=-1).astype(np.float32)  # (K, T, 2)


# ----------------------------------------------------------------------------
# Host-side precomputation (cached / one-time)
# ----------------------------------------------------------------------------
@functools.lru_cache(maxsize=None)
def dft_twiddle_bf16(T):
    """Fused (2T, 2T) twiddle: [re/im-interleaved rows] @ W = [Xr | Xi]."""
    t = np.arange(T)
    ang = (2.0 * np.pi / T) * ((t[:, None] * t[None, :]) % T).astype(np.float64)
    C = np.cos(ang)                      # C[t, f] = cos(2*pi*t*f/T)
    S = np.sin(ang)                      # S[t, f] = sin(2*pi*t*f/T)
    W = np.empty((2 * T, 2 * T), np.float64)
    W[0::2, :T] = C                      # xr[t] -> Xr[f]
    W[1::2, :T] = S                      # xim[t] -> Xr[f]
    W[0::2, T:] = -S                     # xr[t] -> Xi[f]
    W[1::2, T:] = C                      # xim[t] -> Xi[f]
    return jnp.asarray(W, dtype=jnp.bfloat16)


def prepare_psi_sq(psi_hat, sublane=8):
    """|psi_hat|^2, pre-transposed to (Kp8, T) and stored bf16 (MXU-native)."""
    p = np.asarray(psi_hat, dtype=np.float64)
    mod2 = p[..., 0] ** 2 + p[..., 1] ** 2        # (K, T); imag is 0 anyway
    K, T = mod2.shape
    Kp8 = ((K + sublane - 1) // sublane) * sublane
    out = np.zeros((Kp8, T), np.float32)
    out[:K, :] = mod2
    return jnp.asarray(out, dtype=jnp.bfloat16), K


# ----------------------------------------------------------------------------
# Pallas kernel: one bf16 DFT matmul + f32 |X|^2 + one bf16 reduction matmul
# ----------------------------------------------------------------------------
def wavelet_kernel(x2_ref, w_ref, p_ref, out_ref):
    # x2_ref: (tm, 2T) f32  -- rows of time-interleaved (re, im) samples
    # w_ref : (2T, 2T) bf16 -- fused DFT twiddle, output columns = [Xr | Xi]
    # p_ref : (Kp8, T) bf16 -- |psi_hat|^2, pre-transposed, zero-padded rows
    # out   : (Kp8, tm) f32 -- transposed energies (lane-dense over the M tile)
    xb = x2_ref[...].astype(jnp.bfloat16)
    y = jnp.dot(xb, w_ref[...], preferred_element_type=jnp.float32)   # (tm, 2T) f32
    T = w_ref.shape[1] // 2
    Xr = y[:, :T]
    Xi = y[:, T:]
    mod2 = Xr * Xr + Xi * Xi                                          # (tm, T) f32, VPU
    mod2_t = jnp.transpose(mod2).astype(jnp.bfloat16)                 # (T, tm), XLU
    # sum_f |x_hat * psi_hat|^2 == |psi_hat|^2 @ (|x_hat|^2)^T
    out_ref[...] = jnp.dot(p_ref[...], mod2_t,
                           preferred_element_type=jnp.float32)        # (Kp8, tm)


def _pick_tm(M):
    """M-tile size: single block for small M; else a multiple of 128 with
    >= 2 grid steps (v7x dual-TC coverage), capped at 512."""
    if M <= 128:
        return M
    return 128 * max(1, min(4, M // 256))


def wavelet_forward(x, psi_sq, K):
    """x: (B, C, T, 2) f32; psi_sq: (Kp8, T) bf16 (prepare_psi_sq) -> (B, C, K)."""
    B, Cc, T, two = x.shape
    assert two == 2
    M = B * Cc
    Kp8 = psi_sq.shape[0]
    W = dft_twiddle_bf16(T)

    x2 = x.reshape(M, 2 * T)        # contiguous reshape; re/im interleaved; NO pad pass
    tm = _pick_tm(M)
    grid_m = pl.cdiv(M, tm)         # ragged last block: padded input rows only feed
                                    # out-of-range output columns (masked on store)

    # VMEM budget: double-buffered tiles + intermediates, floored/capped so it is
    # safe on every generation (<= 32 MiB, within v7x's 64 MiB physical).
    vmem_est = (2 * tm * 2 * T * 4            # x tile, f32
                + 2 * (2 * T) * (2 * T) * 2   # W, bf16
                + 2 * Kp8 * T * 2             # |psi|^2, bf16
                + 2 * Kp8 * tm * 4            # out tile, f32
                + 8 * tm * 2 * T * 4)         # y / mod2 / transpose temporaries
    vmem_limit = int(min(max(vmem_est, 4 * 1024 * 1024), 32 * 1024 * 1024))

    out = pl.pallas_call(
        wavelet_kernel,
        out_shape=jax.ShapeDtypeStruct((Kp8, M), jnp.float32),
        grid=(grid_m,),
        in_specs=[
            pl.BlockSpec((tm, 2 * T), lambda i: (i, 0)),
            pl.BlockSpec((2 * T, 2 * T), lambda i: (0, 0)),
            pl.BlockSpec((Kp8, T), lambda i: (0, 0)),
        ],
        out_specs=pl.BlockSpec((Kp8, tm), lambda i: (0, i)),
        compiler_params=pltpu.CompilerParams(
            dimension_semantics=("parallel",),       # shard M tiles over both v7x TCs
            vmem_limit_bytes=vmem_limit),
    )(x2, W, psi_sq)

    return out[:K, :].T.reshape(B, Cc, K)


# ----------------------------------------------------------------------------
# Pure-JAX reference (mirrors the torch ops 1:1) for validation
# ----------------------------------------------------------------------------
def wavelet_reference(x, psi_hat):
    psi_hat = jnp.asarray(psi_hat)
    xc = x[..., 0].astype(jnp.complex64) + 1j * x[..., 1].astype(jnp.complex64)
    x_hat = jnp.fft.fft(xc, axis=-1)[:, :, None, :]                # (B, C, 1, T)
    psi_c = psi_hat[..., 0] + 1j * psi_hat[..., 1]                 # (K, T)
    x_filt = x_hat * psi_c[None, None, :, :]                       # (B, C, K, T)
    return jnp.sum(jnp.abs(x_filt) ** 2, axis=-1)                  # (B, C, K)


if __name__ == "__main__":
    # TODO(synk): the pruned second-order phase-harmonic coefficients
    # (PhaseHarmonic with k != 0, compute_idx_info index selection, ifft) are
    # not implemented here; only the wavelet-filtering energy path is.
    N, Q, T = 4, 2, 128          # K = N*Q = 8 filters, temporal support 128
    B, Cc = 2, 4

    psi_hat = build_psi_hat(N, Q, T)                               # (8, 128, 2)
    psi_sq, K = prepare_psi_sq(psi_hat)                            # (8, 128) bf16, K=8

    key = jax.random.PRNGKey(0)
    x = jax.random.normal(key, (B, Cc, T, 2), dtype=jnp.float32)   # complex-as-last-dim

    out = wavelet_forward(x, psi_sq, K)
    out = jax.block_until_ready(out)

    ref = wavelet_reference(x, psi_hat)
    assert out.shape == (B, Cc, K), out.shape
    # bf16 MXU inputs with f32 accumulation (DFT + positive-energy reduction):
    # measured relative error at T=128 is a few tenths of a percent.
    assert jnp.allclose(out, ref, rtol=2e-2, atol=1e-2), (
        float(jnp.max(jnp.abs(out - ref))))

    print("KERNEL_OK")
</pallas_src>

<mosaic_0001>
module attributes {stable_mosaic.version = 11 : i64} {
  func.func @wavelet_kernel(%arg0: i32, %arg1: memref<8x256xf32, #tpu.memory_space<vmem>>, %arg2: memref<256x256xbf16, #tpu.memory_space<vmem>>, %arg3: memref<8x128xbf16, #tpu.memory_space<vmem>>, %arg4: memref<8x8xf32, #tpu.memory_space<vmem>>) attributes {dimension_semantics = [#tpu.dimension_semantics<parallel>], iteration_bounds = array<i64: 1>, scalar_prefetch = 0 : i64, scratch_operands = 0 : i64, tpu.core_type = #tpu.core_type<tc>, window_params = [{transform_indices = @transform_0, window_bounds = array<i64: 8, 256>}, {pipeline_mode = #tpu.pipeline_mode<synchronous>, transform_indices = @transform_1, window_bounds = array<i64: 256, 256>}, {pipeline_mode = #tpu.pipeline_mode<synchronous>, transform_indices = @transform_2, window_bounds = array<i64: 8, 128>}, {transform_indices = @transform_3, window_bounds = array<i64: 8, 8>}]} {
    %c0 = arith.constant 0 : index
    %c0_0 = arith.constant 0 : index
    %0 = vector.load %arg1[%c0, %c0_0] : memref<8x256xf32, #tpu.memory_space<vmem>>, vector<8x256xf32>
    %1 = arith.truncf %0 : vector<8x256xf32> to vector<8x256xbf16>
    %c0_1 = arith.constant 0 : index
    %c0_2 = arith.constant 0 : index
    %2 = vector.load %arg2[%c0_1, %c0_2] : memref<256x256xbf16, #tpu.memory_space<vmem>>, vector<256x256xbf16>
    %cst = arith.constant dense<0.000000e+00> : vector<8x256xf32>
    %3 = tpu.matmul %1, %2, %cst {dimension_numbers = #tpu.dot_dimension_numbers<[1], [0], [0], [1], [0, 0, 1, 1], [], []>} : vector<8x256xbf16>, vector<256x256xbf16>, vector<8x256xf32> -> vector<8x256xf32>
    %4 = vector.extract_strided_slice %3 {offsets = [0, 0], sizes = [8, 128], strides = [1, 1]} : vector<8x256xf32> to vector<8x128xf32>
    %5 = vector.extract_strided_slice %3 {offsets = [0, 128], sizes = [8, 128], strides = [1, 1]} : vector<8x256xf32> to vector<8x128xf32>
    %6 = arith.mulf %4, %4 : vector<8x128xf32>
    %7 = arith.mulf %5, %5 : vector<8x128xf32>
    %8 = arith.addf %6, %7 : vector<8x128xf32>
    %9 = tpu.transpose %8, [1, 0] : vector<8x128xf32> -> vector<128x8xf32>
    %10 = arith.truncf %9 : vector<128x8xf32> to vector<128x8xbf16>
    %c0_3 = arith.constant 0 : index
    %c0_4 = arith.constant 0 : index
    %11 = vector.load %arg3[%c0_3, %c0_4] : memref<8x128xbf16, #tpu.memory_space<vmem>>, vector<8x128xbf16>
    %cst_5 = arith.constant dense<0.000000e+00> : vector<8x8xf32>
    %12 = tpu.matmul %11, %10, %cst_5 {dimension_numbers = #tpu.dot_dimension_numbers<[1], [0], [0], [1], [0, 0, 1, 1], [], []>} : vector<8x128xbf16>, vector<128x8xbf16>, vector<8x8xf32> -> vector<8x8xf32>
    %c0_6 = arith.constant 0 : index
    %c0_7 = arith.constant 0 : index
    %13 = vector.load %arg4[%c0_6, %c0_7] : memref<8x8xf32, #tpu.memory_space<vmem>>, vector<8x8xf32>
    tpu.vector_store %arg4[%c0_6, %c0_7], %12 {strides = array<i32>} : memref<8x8xf32, #tpu.memory_space<vmem>>, vector<8x8xf32>,
    return
  }
  func.func @transform_0(%arg0: i32) -> (i32, i32) {
    %c0_i32 = arith.constant 0 : i32
    %c0_i32_0 = arith.constant 0 : i32
    return %arg0, %c0_i32 : i32, i32
  }
  func.func @transform_1(%arg0: i32) -> (i32, i32) {
    %c0_i32 = arith.constant 0 : i32
    %c0_i32_0 = arith.constant 0 : i32
    %c0_i32_1 = arith.constant 0 : i32
    return %c0_i32, %c0_i32_0 : i32, i32
  }
  func.func @transform_2(%arg0: i32) -> (i32, i32) {
    %c0_i32 = arith.constant 0 : i32
    %c0_i32_0 = arith.constant 0 : i32
    %c0_i32_1 = arith.constant 0 : i32
    return %c0_i32, %c0_i32_0 : i32, i32
  }
  func.func @transform_3(%arg0: i32) -> (i32, i32) {
    %c0_i32 = arith.constant 0 : i32
    %c0_i32_0 = arith.constant 0 : i32
    return %c0_i32, %arg0 : i32, i32
  }
}

</mosaic_0001>

<llo_original>
// kernel: tpu_custom_call.1
$region0: #{tpu_custom_call.1}
  #allocation0 [shape = 'u32[]', space=smem, size = 0x4, offset = 0x4, fixed_abs, tag = 'smem constant byte address 0x4 - core index']
  #allocation1 [shape = 'u32[72,128]{1,0:T(1,128)}', space=vmem, size = 0x9000, scoped, tag = 'internal scratch']
  %s0 = inlined_call_operand.hbm [shape: f32[8,256], index: 0, kind: input, shape index: {}]
  %s1 = inlined_call_operand.hbm [shape: bf16[256,256], index: 1, kind: input, shape index: {}]
  %s2 = inlined_call_operand.hbm [shape: bf16[8,128], index: 2, kind: input, shape index: {}]
  %s3 = inlined_call_operand.hbm [shape: f32[8,8], index: 3, kind: output, shape index: {}]
  %s4 = sld [smem:[#allocation0]]
  $region34: #{tpu_custom_call.1} parent=0
    _
  %s6 = ssub.s32 1, %s4
  %s7 = scalar_select 0, %s6, %s4
  $region1: #{tpu_custom_call.1} parent=0
    #allocation2 [shape = 'u8[8192]{0}', space=vmem, size = 0x2000, scoped, tag = 'input window, operand 0, single buffered']
    #allocation3 [shape = 's32[1]{0}', space=sflag, size = 0x4, scoped, tag = 'scoped memory for tpu_custom_call.1']
    #allocation4 [shape = 's32[1]{0}', space=sflag, size = 0x4, scoped, tag = 'scoped memory for tpu_custom_call.1']
    #allocation5 [shape = 'u8[131072]{0}', space=vmem, size = 0x20000, scoped, tag = 'input window, operand 1, single buffered']
    #allocation6 [shape = 's32[1]{0}', space=sflag, size = 0x4, scoped, tag = 'scoped memory for tpu_custom_call.1']
    #allocation7 [shape = 'u8[2048]{0}', space=vmem, size = 0x800, scoped, tag = 'input window, operand 2, single buffered']
    #allocation8 [shape = 'u8[4096]{0}', space=vmem, size = 0x1000, scoped, tag = 'output window, operand 0, single buffered']
    %8 = vsyncpa [#allocation3], 0
    %9 = vsyncpa [#allocation6], 0
    %10 = vsyncpa [#allocation4], 0
    // Predicated region
    $region2: #{tpu_custom_call.1} parent=1 // pred_check
      _
    $region3: #{tpu_custom_call.1} parent=1 // pred_check_branch
      %12 = sbr.rel (0) target = $region5
    $region4: #{tpu_custom_call.1} parent=1 // pred_region
      %14 = vsyncadd [#allocation3], 0
      %s16 = sshll.u32 %s0, 4
      %s17 = int_to_ptr.hbm [resolvable:$true] %s16
      %s18 = sshll.u32 [#allocation2], 4
      %s19 = int_to_ptr.vmem [resolvable:$true] %s18
      %21 = dma.hbm_to_vmem [thread:$0]  %s17, 256, %s19, [#allocation3]
    $region5: #{tpu_custom_call.1} parent=1 // pred_fallthru
      _
    // Predicated region
    $region6: #{tpu_custom_call.1} parent=1 // pred_check
      _
    $region7: #{tpu_custom_call.1} parent=1 // pred_check_branch
      %23 = sbr.rel (0) target = $region9
    $region8: #{tpu_custom_call.1} parent=1 // pred_region
      %25 = vsyncadd [#allocation6], 0
      %s26 = sshll.u32 %s1, 4
      %s27 = int_to_ptr.hbm [resolvable:$true] %s26
      %s28 = sshll.u32 [#allocation5], 4
      %s29 = int_to_ptr.vmem [resolvable:$true] %s28
      %34 = dma.hbm_to_vmem [thread:$0]  %s27, 4096, %s29, [#allocation6], 128, 128, 8
    $region9: #{tpu_custom_call.1} parent=1 // pred_fallthru
      _
    // Predicated region
    $region10: #{tpu_custom_call.1} parent=1 // pred_check
      _
    $region11: #{tpu_custom_call.1} parent=1 // pred_check_branch
      %36 = sbr.rel (0) target = $region13
    $region12: #{tpu_custom_call.1} parent=1 // pred_region
      %38 = vsyncadd [#allocation6], 0
      %s40 = sshll.u32 %s2, 4
      %s41 = int_to_ptr.hbm [resolvable:$true] %s40
      %s42 = sshll.u32 [#allocation7], 4
      %s43 = int_to_ptr.vmem [resolvable:$true] %s42
      %45 = dma.hbm_to_vmem [thread:$0]  %s41, 64, %s43, [#allocation6]
    $region13: #{tpu_custom_call.1} parent=1 // pred_fallthru
      _
    // Predicated region
    $region14: #{tpu_custom_call.1} parent=1 // pred_check
      _
    $region15: #{tpu_custom_call.1} parent=1 // pred_check_branch
      %47 = sbr.rel (0) target = $region17
    $region16: #{tpu_custom_call.1} parent=1 // pred_region
      %49 = dma.done [#allocation3], 256
    $region17: #{tpu_custom_call.1} parent=1 // pred_fallthru
      _
    // Predicated region
    $region18: #{tpu_custom_call.1} parent=1 // pred_check
      _
    $region19: #{tpu_custom_call.1} parent=1 // pred_check_branch
      %51 = sbr.rel (0) target = $region21
    $region20: #{tpu_custom_call.1} parent=1 // pred_region
      %53 = dma.done [#allocation6], 4096
    $region21: #{tpu_custom_call.1} parent=1 // pred_fallthru
      _
    // Predicated region
    $region22: #{tpu_custom_call.1} parent=1 // pred_check
      _
    $region23: #{tpu_custom_call.1} parent=1 // pred_check_branch
      %55 = sbr.rel (0) target = $region25
    $region24: #{tpu_custom_call.1} parent=1 // pred_region
      %57 = dma.done [#allocation6], 64
    $region25: #{tpu_custom_call.1} parent=1 // pred_fallthru
      _
    %v58 = vld [vmem:[#allocation2] sm:$0xff]
    %v59 = vld [vmem:[#allocation2 + $0x8] sm:$0xff]
    %v60 = vpack.c.bf16 %v58, %v58
    %v61 = vpack.c.bf16 %v59, %v59
    %v62 = vld [vmem:[#allocation5] sm:$0xff]
    %v63 = vld [vmem:[#allocation5 + $0x8] sm:$0xff]
    %v64 = vld [vmem:[#allocation5 + $0x10] sm:$0xff]
    %v65 = vld [vmem:[#allocation5 + $0x18] sm:$0xff]
    %v66 = vld [vmem:[#allocation5 + $0x20] sm:$0xff]
    %v67 = vld [vmem:[#allocation5 + $0x28] sm:$0xff]
    %v68 = vld [vmem:[#allocation5 + $0x30] sm:$0xff]
    %v69 = vld [vmem:[#allocation5 + $0x38] sm:$0xff]
    %v70 = vld [vmem:[#allocation5 + $0x40] sm:$0xff]
    %v71 = vld [vmem:[#allocation5 + $0x48] sm:$0xff]
    %v72 = vld [vmem:[#allocation5 + $0x50] sm:$0xff]
    %v73 = vld [vmem:[#allocation5 + $0x58] sm:$0xff]
    %v74 = vld [vmem:[#allocation5 + $0x60] sm:$0xff]
    %v75 = vld [vmem:[#allocation5 + $0x68] sm:$0xff]
    %v76 = vld [vmem:[#allocation5 + $0x70] sm:$0xff]
    %v77 = vld [vmem:[#allocation5 + $0x78] sm:$0xff]
    %v78 = vld [vmem:[#allocation5 + $0x80] sm:$0xff]
    %v79 = vld [vmem:[#allocation5 + $0x88] sm:$0xff]
    %v80 = vld [vmem:[#allocation5 + $0x90] sm:$0xff]
    %v81 = vld [vmem:[#allocation5 + $0x98] sm:$0xff]
    %v82 = vld [vmem:[#allocation5 + $0xa0] sm:$0xff]
    %v83 = vld [vmem:[#allocation5 + $0xa8] sm:$0xff]
    %v84 = vld [vmem:[#allocation5 + $0xb0] sm:$0xff]
    %v85 = vld [vmem:[#allocation5 + $0xb8] sm:$0xff]
    %v86 = vld [vmem:[#allocation5 + $0xc0] sm:$0xff]
    %v87 = vld [vmem:[#allocation5 + $0xc8] sm:$0xff]
    %v88 = vld [vmem:[#allocation5 + $0xd0] sm:$0xff]
    %v89 = vld [vmem:[#allocation5 + $0xd8] sm:$0xff]
    %v90 = vld [vmem:[#allocation5 + $0xe0] sm:$0xff]
    %v91 = vld [vmem:[#allocation5 + $0xe8] sm:$0xff]
    %v92 = vld [vmem:[#allocation5 + $0xf0] sm:$0xff]
    %v93 = vld [vmem:[#allocation5 + $0xf8] sm:$0xff]
    %v126 = vunpack.c.l.b16 %v62
    %v127 = vunpack.c.h.b16 %v62
    %v128 = vunpack.c.l.b16 %v63
    %v129 = vunpack.c.h.b16 %v63
    %v130 = vunpack.c.l.b16 %v64
    %v131 = vunpack.c.h.b16 %v64
    %v132 = vunpack.c.l.b16 %v65
    %v133 = vunpack.c.h.b16 %v65
    %v134 = vunpack.c.l.b16 %v66
    %v135 = vunpack.c.h.b16 %v66
    %v136 = vunpack.c.l.b16 %v67
    %v137 = vunpack.c.h.b16 %v67
    %v138 = vunpack.c.l.b16 %v68
    %v139 = vunpack.c.h.b16 %v68
    %v140 = vunpack.c.l.b16 %v69
    %v141 = vunpack.c.h.b16 %v69
    %v142 = vunpack.c.l.b16 %v70
    %v143 = vunpack.c.h.b16 %v70
    %v144 = vunpack.c.l.b16 %v71
    %v145 = vunpack.c.h.b16 %v71
    %v146 = vunpack.c.l.b16 %v72
    %v147 = vunpack.c.h.b16 %v72
    %v148 = vunpack.c.l.b16 %v73
    %v149 = vunpack.c.h.b16 %v73
    %v150 = vunpack.c.l.b16 %v74
    %v151 = vunpack.c.h.b16 %v74
    %v152 = vunpack.c.l.b16 %v75
    %v153 = vunpack.c.h.b16 %v75
    %v154 = vunpack.c.l.b16 %v76
    %v155 = vunpack.c.h.b16 %v76
    %v156 = vunpack.c.l.b16 %v77
    %v157 = vunpack.c.h.b16 %v77
    %v158 = vunpack.c.l.b16 %v78
    %v159 = vunpack.c.h.b16 %v78
    %v160 = vunpack.c.l.b16 %v79
    %v161 = vunpack.c.h.b16 %v79
    %v162 = vunpack.c.l.b16 %v80
    %v163 = vunpack.c.h.b16 %v80
    %v164 = vunpack.c.l.b16 %v81
    %v165 = vunpack.c.h.b16 %v81
    %v166 = vunpack.c.l.b16 %v82
    %v167 = vunpack.c.h.b16 %v82
    %v168 = vunpack.c.l.b16 %v83
    %v169 = vunpack.c.h.b16 %v83
    %v170 = vunpack.c.l.b16 %v84
    %v171 = vunpack.c.h.b16 %v84
    %v172 = vunpack.c.l.b16 %v85
    %v173 = vunpack.c.h.b16 %v85
    %v174 = vunpack.c.l.b16 %v86
    %v175 = vunpack.c.h.b16 %v86
    %v176 = vunpack.c.l.b16 %v87
    %v177 = vunpack.c.h.b16 %v87
    %v178 = vunpack.c.l.b16 %v88
    %v179 = vunpack.c.h.b16 %v88
    %v180 = vunpack.c.l.b16 %v89
    %v181 = vunpack.c.h.b16 %v89
    %v182 = vunpack.c.l.b16 %v90
    %v183 = vunpack.c.h.b16 %v90
    %v184 = vunpack.c.l.b16 %v91
    %v185 = vunpack.c.h.b16 %v91
    %v186 = vunpack.c.l.b16 %v92
    %v187 = vunpack.c.h.b16 %v92
    %v188 = vunpack.c.l.b16 %v93
    %v189 = vunpack.c.h.b16 %v93
    %v190 = vpack.c.b16 %v128, %v126
    %v191 = vpack.c.b16 %v129, %v127
    %v192 = vpack.c.b16 %v132, %v130
    %v193 = vpack.c.b16 %v133, %v131
    %v194 = vpack.c.b16 %v136, %v134
    %v195 = vpack.c.b16 %v137, %v135
    %v196 = vpack.c.b16 %v140, %v138
    %v197 = vpack.c.b16 %v141, %v139
    %v198 = vpack.c.b16 %v144, %v142
    %v199 = vpack.c.b16 %v145, %v143
    %v200 = vpack.c.b16 %v148, %v146
    %v201 = vpack.c.b16 %v149, %v147
    %v202 = vpack.c.b16 %v152, %v150
    %v203 = vpack.c.b16 %v153, %v151
    %v204 = vpack.c.b16 %v156, %v154
    %v205 = vpack.c.b16 %v157, %v155
    %v206 = vpack.c.b16 %v160, %v158
    %v207 = vpack.c.b16 %v161, %v159
    %v208 = vpack.c.b16 %v164, %v162
    %v209 = vpack.c.b16 %v165, %v163
    %v210 = vpack.c.b16 %v168, %v166
    %v211 = vpack.c.b16 %v169, %v167
    %v212 = vpack.c.b16 %v172, %v170
    %v213 = vpack.c.b16 %v173, %v171
    %v214 = vpack.c.b16 %v176, %v174
    %v215 = vpack.c.b16 %v177, %v175
    %v216 = vpack.c.b16 %v180, %v178
    %v217 = vpack.c.b16 %v181, %v179
    %v218 = vpack.c.b16 %v184, %v182
    %v219 = vpack.c.b16 %v185, %v183
    %v220 = vpack.c.b16 %v188, %v186
    %v221 = vpack.c.b16 %v189, %v187
    %254 = vmatpush.bf16.msra.mxu0 %v204
    %255 = vmatpush.bf16.msra.mxu0 %v202
    %256 = vmatpush.bf16.msra.mxu0 %v200
    %257 = vmatpush.bf16.msra.mxu0 %v198
    %258 = vmatpush.bf16.msra.mxu0 %v196
    %259 = vmatpush.bf16.msra.mxu0 %v194
    %260 = vmatpush.bf16.msra.mxu0 %v192
    %261 = vmatpush.bf16.msra.mxu0 %v190
    %262 = vmatmul.bf16.gmra.mxu0 %v60
    %v263 = vpop.f32.mrf.mxu0
    %v264 = vadd.f32 0.0, %v263
    %v265 = vpop.f32.mrf.mxu0
    %266 = vdwg.mxu0
    %267 = vmatpush.bf16.msra.mxu0 %v220
    %268 = vmatpush.bf16.msra.mxu0 %v218
    %269 = vmatpush.bf16.msra.mxu0 %v216
    %270 = vmatpush.bf16.msra.mxu0 %v214
    %271 = vmatpush.bf16.msra.mxu0 %v212
    %272 = vmatpush.bf16.msra.mxu0 %v210
    %273 = vmatpush.bf16.msra.mxu0 %v208
    %274 = vmatpush.bf16.msra.mxu0 %v206
    %275 = vmatmul.bf16.gmra.mxu0 %v61
    %v276 = vpop.f32.mrf.mxu0
    %v277 = vadd.f32 %v264, %v276
    %v278 = vpop.f32.mrf.mxu0
    %279 = vdwg.mxu0
    %280 = vmatpush.bf16.msra.mxu0 %v205
    %281 = vmatpush.bf16.msra.mxu0 %v203
    %282 = vmatpush.bf16.msra.mxu0 %v201
    %283 = vmatpush.bf16.msra.mxu0 %v199
    %284 = vmatpush.bf16.msra.mxu0 %v197
    %285 = vmatpush.bf16.msra.mxu0 %v195
    %286 = vmatpush.bf16.msra.mxu0 %v193
    %287 = vmatpush.bf16.msra.mxu0 %v191
    %288 = vmatmul.bf16.gmra.mxu0 %v60
    %v289 = vpop.f32.mrf.mxu0
    %v290 = vadd.f32 0.0, %v289
    %v291 = vpop.f32.mrf.mxu0
    %292 = vdwg.mxu0
    %293 = vmatpush.bf16.msra.mxu0 %v221
    %294 = vmatpush.bf16.msra.mxu0 %v219
    %295 = vmatpush.bf16.msra.mxu0 %v217
    %296 = vmatpush.bf16.msra.mxu0 %v215
    %297 = vmatpush.bf16.msra.mxu0 %v213
    %298 = vmatpush.bf16.msra.mxu0 %v211
    %299 = vmatpush.bf16.msra.mxu0 %v209
    %300 = vmatpush.bf16.msra.mxu0 %v207
    %301 = vmatmul.bf16.gmra.mxu0 %v61
    %v302 = vpop.f32.mrf.mxu0
    %v303 = vadd.f32 %v290, %v302
    %v304 = vpop.f32.mrf.mxu0
    %305 = vdwg.mxu0
    %v306 = vmul.f32 %v277, %v277
    %v307 = vmul.f32 %v303, %v303
    %v308 = vadd.f32 %v306, %v307
    %309 = vxpose.xlu0.b32.start [1/16] %v308, 128
    %310 = vxpose.xlu0.b32.cont [2/16] 0.0, 128
    %311 = vxpose.xlu0.b32.cont [3/16] 0.0, 128
    %312 = vxpose.xlu0.b32.cont [4/16] 0.0, 128
    %313 = vxpose.xlu0.b32.cont [5/16] 0.0, 128
    %314 = vxpose.xlu0.b32.cont [6/16] 0.0, 128
    %315 = vxpose.xlu0.b32.cont [7/16] 0.0, 128
    %316 = vxpose.xlu0.b32.cont [8/16] 0.0, 128
    %317 = vxpose.xlu0.b32.cont [9/16] 0.0, 128
    %318 = vxpose.xlu0.b32.cont [10/16] 0.0, 128
    %319 = vxpose.xlu0.b32.cont [11/16] 0.0, 128
    %320 = vxpose.xlu0.b32.cont [12/16] 0.0, 128
    %321 = vxpose.xlu0.b32.cont [13/16] 0.0, 128
    %322 = vxpose.xlu0.b32.cont [14/16] 0.0, 128
    %323 = vxpose.xlu0.b32.cont [15/16] 0.0, 128
    %324 = vxpose.xlu0.b32.end [16/16] 0.0, 128
    %v325 = vpop.trf.xlu0
    %v326 = vpop.trf.xlu0
    %v327 = vpop.trf.xlu0
    %v328 = vpop.trf.xlu0
    %v329 = vpop.trf.xlu0
    %v330 = vpop.trf.xlu0
    %v331 = vpop.trf.xlu0
    %v332 = vpop.trf.xlu0
    %v333 = vpop.trf.xlu0
    %v334 = vpop.trf.xlu0
    %v335 = vpop.trf.xlu0
    %v336 = vpop.trf.xlu0
    %v337 = vpop.trf.xlu0
    %v338 = vpop.trf.xlu0
    %v339 = vpop.trf.xlu0
    %v340 = vpop.trf.xlu0
    %v341 = vpack.c.bf16 %v326, %v325
    %v342 = vpack.c.bf16 %v328, %v327
    %v343 = vpack.c.bf16 %v330, %v329
    %v344 = vpack.c.bf16 %v332, %v331
    %v345 = vpack.c.bf16 %v334, %v333
    %v346 = vpack.c.bf16 %v336, %v335
    %v347 = vpack.c.bf16 %v338, %v337
    %v348 = vpack.c.bf16 %v340, %v339
    %v349 = vld [vmem:[#allocation7] sm:$0xf]
    %350 = vmatpush.bf16.msra.mxu0 %v348
    %351 = vmatpush.bf16.msra.mxu0 %v347
    %352 = vmatpush.bf16.msra.mxu0 %v346
    %353 = vmatpush.bf16.msra.mxu0 %v345
    %354 = vmatpush.bf16.msra.mxu0 %v344
    %355 = vmatpush.bf16.msra.mxu0 %v343
    %356 = vmatpush.bf16.msra.mxu0 %v342
    %357 = vmatpush.bf16.msra.mxu0 %v341
    %358 = vmatmul.bf16.gmra.mxu0 %v349
    %v359 = vpop.f32.mrf.mxu0
    %v360 = vadd.f32 0.0, %v359
    %v361 = vpop.f32.mrf.mxu0
    %362 = vdwg.mxu0
    %vm363 = vcmask 64512
    %364 = vst.msk [vmem:[#allocation8] sm:$0xff] %vm363, %v360
    // Predicated region
    $region26: #{tpu_custom_call.1} parent=1 // pred_check
      _
    $region27: #{tpu_custom_call.1} parent=1 // pred_check_branch
      %366 = sbr.rel (0) target = $region29
    $region28: #{tpu_custom_call.1} parent=1 // pred_region
      %368 = vsyncadd [#allocation4], 0
      %s370 = sshll.u32 [#allocation8], 4
      %s371 = int_to_ptr.vmem [resolvable:$true] %s370
      %s372 = sshll.u32 %s3, 4
      %s373 = int_to_ptr.hbm [resolvable:$true] %s372
      %375 = dma.vmem_to_hbm [thread:$0]  %s371, 128, %s373, [#allocation4]
    $region29: #{tpu_custom_call.1} parent=1 // pred_fallthru
      _
    // Predicated region
    $region30: #{tpu_custom_call.1} parent=1 // pred_check
      _
    $region31: #{tpu_custom_call.1} parent=1 // pred_check_branch
      %377 = sbr.rel (0) target = $region33
    $region32: #{tpu_custom_call.1} parent=1 // pred_region
      %379 = dma.done [#allocation4], 128
    $region33: #{tpu_custom_call.1} parent=1 // pred_fallthru
      _
    %380 = vsyncpa [#allocation3], 1
    %381 = vsyncpa [#allocation6], 1
    %382 = vsyncpa [#allocation4], 1

</llo_original>
